<compile_context>
chip_gen: v5e
topology: v5e:2x2
jax: 0.10.0
libtpu: 0.0.40
codegen_flags: <defaults>
</compile_context>

<pallas_src>
import functools

import jax
import jax.numpy as jnp
from jax.experimental import pallas as pl
from jax.experimental.pallas import tpu as pltpu


def _qdnn_kernel(x_ref,
                 w1_ref, b1_ref,
                 w2_ref, b2_ref,
                 w3_ref, b3_ref,
                 w4_ref, b4_ref,
                 o_ref):
    """Fused forward: 3x(Linear+ReLU) + Linear, bf16 MXU with f32 accumulation."""
    # Cast inside the kernel (free VALU slack) instead of a wrapper-side pass.
    x = x_ref[...].astype(jnp.bfloat16)               # (block_b, d_in)

    h = jnp.dot(x, w1_ref[...], preferred_element_type=jnp.float32) + b1_ref[...]
    h = jnp.maximum(h, 0.0)
    # Dropout(p=0.3): identity at inference time.

    h = jnp.dot(h.astype(jnp.bfloat16), w2_ref[...],
                preferred_element_type=jnp.float32) + b2_ref[...]
    h = jnp.maximum(h, 0.0)
    # Dropout(p=0.2): identity at inference time.

    h = jnp.dot(h.astype(jnp.bfloat16), w3_ref[...],
                preferred_element_type=jnp.float32) + b3_ref[...]
    h = jnp.maximum(h, 0.0)

    out = jnp.dot(h.astype(jnp.bfloat16), w4_ref[...],
                  preferred_element_type=jnp.float32) + b4_ref[...]
    o_ref[...] = out.astype(o_ref.dtype)               # narrow (block_b, num_classes)


def _round_up(n, m):
    return ((n + m - 1) // m) * m


def prepare_qdnn_params(params):
    """One-time per-model prep: cast weights to bf16 (MXU dtype), biases to f32.

    Do this once outside the per-call path so no pad/cast XLA ops run in front
    of the kernel on every forward call.
    """
    prepped = {}
    for li in range(1, 5):
        prepped[f"w{li}"] = jnp.asarray(params[f"w{li}"], jnp.bfloat16)
        prepped[f"b{li}"] = jnp.asarray(params[f"b{li}"], jnp.float32)
    return prepped


@functools.partial(jax.jit, static_argnames=("block_b",))
def qdnn_forward(x, prepped, *, block_b=1024):
    """x: (B, input_dim) f32.  prepped: output of prepare_qdnn_params."""
    B, d_in = x.shape
    w1, b1 = prepped["w1"], prepped["b1"]
    w2, b2 = prepped["w2"], prepped["b2"]
    w3, b3 = prepped["w3"], prepped["b3"]
    w4, b4 = prepped["w4"], prepped["b4"]
    h1, h2, h3 = w1.shape[1], w2.shape[1], w3.shape[1]
    num_classes = w4.shape[1]

    # Clamp the batch tile to the (sublane-aligned) batch; pad only if needed.
    blk = min(block_b, _round_up(B, 8))
    b_pad = _round_up(B, blk)
    x_p = x if b_pad == B else jnp.pad(x, ((0, b_pad - B), (0, 0)))
    grid = (b_pad // blk,)

    def full(shape):
        # Weight/bias block: same full-array tile every step (stays in VMEM).
        return pl.BlockSpec(shape, lambda i: (0, 0))

    flops = 2 * b_pad * (d_in * h1 + h1 * h2 + h2 * h3 + h3 * num_classes)
    param_bytes = sum(int(p.size) * p.dtype.itemsize
                      for p in (w1, b1, w2, b2, w3, b3, w4, b4))
    bytes_accessed = (int(x_p.size) * x_p.dtype.itemsize
                      + b_pad * num_classes * 4
                      + param_bytes)

    out = pl.pallas_call(
        _qdnn_kernel,
        out_shape=jax.ShapeDtypeStruct((b_pad, num_classes), jnp.float32),
        grid_spec=pltpu.PrefetchScalarGridSpec(
            num_scalar_prefetch=0,
            grid=grid,
            in_specs=[
                pl.BlockSpec((blk, d_in), lambda i: (i, 0)),   # x (streamed)
                full(w1.shape), full(b1.shape),
                full(w2.shape), full(b2.shape),
                full(w3.shape), full(b3.shape),
                full(w4.shape), full(b4.shape),
            ],
            out_specs=pl.BlockSpec((blk, num_classes), lambda i: (i, 0)),
        ),
        compiler_params=pltpu.CompilerParams(
            dimension_semantics=("parallel",)),
        cost_estimate=pl.CostEstimate(
            flops=flops, transcendentals=0, bytes_accessed=bytes_accessed),
    )(x_p, w1, b1, w2, b2, w3, b3, w4, b4)

    return out if b_pad == B else out[:B]


def init_qdnn_params(key, input_dim, num_classes=2):
    """Deterministic init mimicking PyTorch nn.Linear default (uniform +/- 1/sqrt(fan_in))."""
    dims = [input_dim, 128, 64, 32, num_classes]
    params = {}
    for li in range(4):
        fan_in, fan_out = dims[li], dims[li + 1]
        key, kw, kb = jax.random.split(key, 3)
        bound = 1.0 / jnp.sqrt(jnp.float32(fan_in))
        # stored as (in, out) so the kernel does x @ W
        params[f"w{li + 1}"] = jax.random.uniform(
            kw, (fan_in, fan_out), jnp.float32, -bound, bound)
        params[f"b{li + 1}"] = jax.random.uniform(
            kb, (1, fan_out), jnp.float32, -bound, bound)
    return params


def qdnn_reference(x, params):
    """Pure-JAX reference with the same bf16-input / f32-accumulate numerics."""
    def bdot(a, w):
        return jnp.dot(a.astype(jnp.bfloat16), w.astype(jnp.bfloat16),
                       preferred_element_type=jnp.float32)
    h = jnp.maximum(bdot(x, params["w1"]) + params["b1"], 0.0)
    h = jnp.maximum(bdot(h, params["w2"]) + params["b2"], 0.0)
    h = jnp.maximum(bdot(h, params["w3"]) + params["b3"], 0.0)
    return bdot(h, params["w4"]) + params["b4"]


if __name__ == "__main__":
    key = jax.random.PRNGKey(0)
    k_params, k_x = jax.random.split(key)

    input_dim = 32
    num_classes = 2
    batch = 384          # 3 grid steps at block_b=128, no batch padding needed
    block_b = 128

    params = init_qdnn_params(k_params, input_dim, num_classes)
    prepped = prepare_qdnn_params(params)   # one-time pad/cast, outside the call path
    x = jax.random.normal(k_x, (batch, input_dim), jnp.float32)

    out = qdnn_forward(x, prepped, block_b=block_b)
    out = jax.block_until_ready(out)

    ref = qdnn_reference(x, params)
    assert out.shape == (batch, num_classes), out.shape
    assert jnp.allclose(out, ref, atol=2e-3, rtol=2e-3), "mismatch vs reference"

    print("KERNEL_OK")
</pallas_src>

<mosaic_0001>
module attributes {stable_mosaic.version = 11 : i64} {
  func.func @_qdnn_kernel(%arg0: i32, %arg1: memref<128x32xf32, #tpu.memory_space<vmem>>, %arg2: memref<32x128xbf16, #tpu.memory_space<vmem>>, %arg3: memref<1x128xf32, #tpu.memory_space<vmem>>, %arg4: memref<128x64xbf16, #tpu.memory_space<vmem>>, %arg5: memref<1x64xf32, #tpu.memory_space<vmem>>, %arg6: memref<64x32xbf16, #tpu.memory_space<vmem>>, %arg7: memref<1x32xf32, #tpu.memory_space<vmem>>, %arg8: memref<32x2xbf16, #tpu.memory_space<vmem>>, %arg9: memref<1x2xf32, #tpu.memory_space<vmem>>, %arg10: memref<128x2xf32, #tpu.memory_space<vmem>>) attributes {dimension_semantics = [#tpu.dimension_semantics<parallel>], iteration_bounds = array<i64: 3>, scalar_prefetch = 0 : i64, scratch_operands = 0 : i64, tpu.core_type = #tpu.core_type<tc>, window_params = [{transform_indices = @transform_0, window_bounds = array<i64: 128, 32>}, {pipeline_mode = #tpu.pipeline_mode<synchronous>, transform_indices = @transform_1, window_bounds = array<i64: 32, 128>}, {pipeline_mode = #tpu.pipeline_mode<synchronous>, transform_indices = @transform_2, window_bounds = array<i64: 1, 128>}, {pipeline_mode = #tpu.pipeline_mode<synchronous>, transform_indices = @transform_3, window_bounds = array<i64: 128, 64>}, {pipeline_mode = #tpu.pipeline_mode<synchronous>, transform_indices = @transform_4, window_bounds = array<i64: 1, 64>}, {pipeline_mode = #tpu.pipeline_mode<synchronous>, transform_indices = @transform_5, window_bounds = array<i64: 64, 32>}, {pipeline_mode = #tpu.pipeline_mode<synchronous>, transform_indices = @transform_6, window_bounds = array<i64: 1, 32>}, {pipeline_mode = #tpu.pipeline_mode<synchronous>, transform_indices = @transform_7, window_bounds = array<i64: 32, 2>}, {pipeline_mode = #tpu.pipeline_mode<synchronous>, transform_indices = @transform_8, window_bounds = array<i64: 1, 2>}, {transform_indices = @transform_9, window_bounds = array<i64: 128, 2>}]} {
    %c0 = arith.constant 0 : index
    %c0_0 = arith.constant 0 : index
    %0 = vector.load %arg1[%c0, %c0_0] : memref<128x32xf32, #tpu.memory_space<vmem>>, vector<128x32xf32>
    %1 = arith.truncf %0 : vector<128x32xf32> to vector<128x32xbf16>
    %c0_1 = arith.constant 0 : index
    %c0_2 = arith.constant 0 : index
    %2 = vector.load %arg2[%c0_1, %c0_2] : memref<32x128xbf16, #tpu.memory_space<vmem>>, vector<32x128xbf16>
    %cst = arith.constant dense<0.000000e+00> : vector<128x128xf32>
    %3 = tpu.matmul %1, %2, %cst {dimension_numbers = #tpu.dot_dimension_numbers<[1], [0], [0], [1], [0, 0, 1, 1], [], []>} : vector<128x32xbf16>, vector<32x128xbf16>, vector<128x128xf32> -> vector<128x128xf32>
    %c0_3 = arith.constant 0 : index
    %c0_4 = arith.constant 0 : index
    %4 = vector.load %arg3[%c0_3, %c0_4] : memref<1x128xf32, #tpu.memory_space<vmem>>, vector<1x128xf32>
    %5 = vector.broadcast %4 : vector<1x128xf32> to vector<128x128xf32>
    %6 = arith.addf %3, %5 : vector<128x128xf32>
    %cst_5 = arith.constant 0.000000e+00 : f32
    %7 = vector.broadcast %cst_5 : f32 to vector<128x128xf32>
    %8 = arith.maximumf %6, %7 : vector<128x128xf32>
    %9 = arith.truncf %8 : vector<128x128xf32> to vector<128x128xbf16>
    %c0_6 = arith.constant 0 : index
    %c0_7 = arith.constant 0 : index
    %10 = vector.load %arg4[%c0_6, %c0_7] : memref<128x64xbf16, #tpu.memory_space<vmem>>, vector<128x64xbf16>
    %cst_8 = arith.constant dense<0.000000e+00> : vector<128x64xf32>
    %11 = tpu.matmul %9, %10, %cst_8 {dimension_numbers = #tpu.dot_dimension_numbers<[1], [0], [0], [1], [0, 0, 1, 1], [], []>} : vector<128x128xbf16>, vector<128x64xbf16>, vector<128x64xf32> -> vector<128x64xf32>
    %c0_9 = arith.constant 0 : index
    %c0_10 = arith.constant 0 : index
    %12 = vector.load %arg5[%c0_9, %c0_10] : memref<1x64xf32, #tpu.memory_space<vmem>>, vector<1x64xf32>
    %13 = vector.broadcast %12 : vector<1x64xf32> to vector<128x64xf32>
    %14 = arith.addf %11, %13 : vector<128x64xf32>
    %cst_11 = arith.constant 0.000000e+00 : f32
    %15 = vector.broadcast %cst_11 : f32 to vector<128x64xf32>
    %16 = arith.maximumf %14, %15 : vector<128x64xf32>
    %17 = arith.truncf %16 : vector<128x64xf32> to vector<128x64xbf16>
    %c0_12 = arith.constant 0 : index
    %c0_13 = arith.constant 0 : index
    %18 = vector.load %arg6[%c0_12, %c0_13] : memref<64x32xbf16, #tpu.memory_space<vmem>>, vector<64x32xbf16>
    %cst_14 = arith.constant dense<0.000000e+00> : vector<128x32xf32>
    %19 = tpu.matmul %17, %18, %cst_14 {dimension_numbers = #tpu.dot_dimension_numbers<[1], [0], [0], [1], [0, 0, 1, 1], [], []>} : vector<128x64xbf16>, vector<64x32xbf16>, vector<128x32xf32> -> vector<128x32xf32>
    %c0_15 = arith.constant 0 : index
    %c0_16 = arith.constant 0 : index
    %20 = vector.load %arg7[%c0_15, %c0_16] : memref<1x32xf32, #tpu.memory_space<vmem>>, vector<1x32xf32>
    %21 = vector.broadcast %20 : vector<1x32xf32> to vector<128x32xf32>
    %22 = arith.addf %19, %21 : vector<128x32xf32>
    %cst_17 = arith.constant 0.000000e+00 : f32
    %23 = vector.broadcast %cst_17 : f32 to vector<128x32xf32>
    %24 = arith.maximumf %22, %23 : vector<128x32xf32>
    %25 = arith.truncf %24 : vector<128x32xf32> to vector<128x32xbf16>
    %c0_18 = arith.constant 0 : index
    %c0_19 = arith.constant 0 : index
    %26 = vector.load %arg8[%c0_18, %c0_19] : memref<32x2xbf16, #tpu.memory_space<vmem>>, vector<32x2xbf16>
    %cst_20 = arith.constant dense<0.000000e+00> : vector<128x2xf32>
    %27 = tpu.matmul %25, %26, %cst_20 {dimension_numbers = #tpu.dot_dimension_numbers<[1], [0], [0], [1], [0, 0, 1, 1], [], []>} : vector<128x32xbf16>, vector<32x2xbf16>, vector<128x2xf32> -> vector<128x2xf32>
    %c0_21 = arith.constant 0 : index
    %c0_22 = arith.constant 0 : index
    %28 = vector.load %arg9[%c0_21, %c0_22] : memref<1x2xf32, #tpu.memory_space<vmem>>, vector<1x2xf32>
    %29 = vector.broadcast %28 : vector<1x2xf32> to vector<128x2xf32>
    %30 = arith.addf %27, %29 : vector<128x2xf32>
    %c0_23 = arith.constant 0 : index
    %c0_24 = arith.constant 0 : index
    %31 = vector.load %arg10[%c0_23, %c0_24] : memref<128x2xf32, #tpu.memory_space<vmem>>, vector<128x2xf32>
    tpu.vector_store %arg10[%c0_23, %c0_24], %30 {strides = array<i32>} : memref<128x2xf32, #tpu.memory_space<vmem>>, vector<128x2xf32>,
    return
  }
  func.func @transform_0(%arg0: i32) -> (i32, i32) {
    %c0_i32 = arith.constant 0 : i32
    %c0_i32_0 = arith.constant 0 : i32
    return %arg0, %c0_i32 : i32, i32
  }
  func.func @transform_1(%arg0: i32) -> (i32, i32) {
    %c0_i32 = arith.constant 0 : i32
    %c0_i32_0 = arith.constant 0 : i32
    %c0_i32_1 = arith.constant 0 : i32
    return %c0_i32, %c0_i32_0 : i32, i32
  }
  func.func @transform_2(%arg0: i32) -> (i32, i32) {
    %c0_i32 = arith.constant 0 : i32
    %c0_i32_0 = arith.constant 0 : i32
    %c0_i32_1 = arith.constant 0 : i32
    return %c0_i32, %c0_i32_0 : i32, i32
  }
  func.func @transform_3(%arg0: i32) -> (i32, i32) {
    %c0_i32 = arith.constant 0 : i32
    %c0_i32_0 = arith.constant 0 : i32
    %c0_i32_1 = arith.constant 0 : i32
    return %c0_i32, %c0_i32_0 : i32, i32
  }
  func.func @transform_4(%arg0: i32) -> (i32, i32) {
    %c0_i32 = arith.constant 0 : i32
    %c0_i32_0 = arith.constant 0 : i32
    %c0_i32_1 = arith.constant 0 : i32
    return %c0_i32, %c0_i32_0 : i32, i32
  }
  func.func @transform_5(%arg0: i32) -> (i32, i32) {
    %c0_i32 = arith.constant 0 : i32
    %c0_i32_0 = arith.constant 0 : i32
    %c0_i32_1 = arith.constant 0 : i32
    return %c0_i32, %c0_i32_0 : i32, i32
  }
  func.func @transform_6(%arg0: i32) -> (i32, i32) {
    %c0_i32 = arith.constant 0 : i32
    %c0_i32_0 = arith.constant 0 : i32
    %c0_i32_1 = arith.constant 0 : i32
    return %c0_i32, %c0_i32_0 : i32, i32
  }
  func.func @transform_7(%arg0: i32) -> (i32, i32) {
    %c0_i32 = arith.constant 0 : i32
    %c0_i32_0 = arith.constant 0 : i32
    %c0_i32_1 = arith.constant 0 : i32
    return %c0_i32, %c0_i32_0 : i32, i32
  }
  func.func @transform_8(%arg0: i32) -> (i32, i32) {
    %c0_i32 = arith.constant 0 : i32
    %c0_i32_0 = arith.constant 0 : i32
    %c0_i32_1 = arith.constant 0 : i32
    return %c0_i32, %c0_i32_0 : i32, i32
  }
  func.func @transform_9(%arg0: i32) -> (i32, i32) {
    %c0_i32 = arith.constant 0 : i32
    %c0_i32_0 = arith.constant 0 : i32
    return %arg0, %c0_i32 : i32, i32
  }
}

</mosaic_0001>

<llo_original>
// kernel: qdnn_forward.1
$region0: #{qdnn_forward.1}
  #allocation0 [shape = 'u32[]', space=smem, size = 0x4, offset = 0x4, fixed_abs, tag = 'smem constant byte address 0x4 - core index']
  #allocation1 [shape = 'u32[72,128]{1,0:T(1,128)}', space=vmem, size = 0x9000, scoped, tag = 'internal scratch']
  %s0 = inlined_call_operand.vmem [shape: f32[384,32], index: 0, kind: input, shape index: {}]
  %s1 = inlined_call_operand.vmem [shape: bf16[32,128], index: 1, kind: input, shape index: {}]
  %s2 = inlined_call_operand.vmem [shape: f32[1,128], index: 2, kind: input, shape index: {}]
  %s3 = inlined_call_operand.vmem [shape: bf16[128,64], index: 3, kind: input, shape index: {}]
  %s4 = inlined_call_operand.vmem [shape: f32[1,64], index: 4, kind: input, shape index: {}]
  %s5 = inlined_call_operand.vmem [shape: bf16[64,32], index: 5, kind: input, shape index: {}]
  %s6 = inlined_call_operand.vmem [shape: f32[1,32], index: 6, kind: input, shape index: {}]
  %s7 = inlined_call_operand.vmem [shape: bf16[32,2], index: 7, kind: input, shape index: {}]
  %s8 = inlined_call_operand.vmem [shape: f32[1,2], index: 8, kind: input, shape index: {}]
  %s9 = inlined_call_operand.vmem [shape: f32[384,2], index: 9, kind: output, shape index: {}]
  %s10 = sld [smem:[#allocation0]]
  $region69: #{qdnn_forward.1} parent=0
    _
  %s12 = ssub.s32 1, %s10
  %s13 = scalar_select 0, %s12, %s10
  loop: start=0, step=1, limit=5
  $region2: #{qdnn_forward.1} parent=0 // loop_pre_header
    _
  $region3: #{qdnn_forward.1} parent=0 // loop_header
    %s15 = sphi 0, %s19
    %p16 = scmp.ge.s32.totalorder %s15, 5
    %s25 = sphi 0, %s27
    %s28 = sphi 0, %s25
    %s29 = sphi 0, %s28
    %s45 = sphi 0, %s29
    %s49 = sphi 0, %s49
    %s51 = sphi 0, %s49
    %s52 = sphi 0, %s51
    %s66 = sphi 0, %s52
    %s70 = sphi 0, %s70
    %s72 = sphi 0, %s70
    %s73 = sphi 0, %s72
    %s87 = sphi 0, %s73
    %s91 = sphi 0, %s91
    %s93 = sphi 0, %s91
    %s94 = sphi 0, %s93
    %s108 = sphi 0, %s94
    %s112 = sphi 0, %s112
    %s114 = sphi 0, %s112
    %s115 = sphi 0, %s114
    %s129 = sphi 0, %s115
    %s133 = sphi 0, %s133
    %s135 = sphi 0, %s133
    %s136 = sphi 0, %s135
    %s150 = sphi 0, %s136
    %s154 = sphi 0, %s154
    %s156 = sphi 0, %s154
    %s157 = sphi 0, %s156
    %s171 = sphi 0, %s157
    %s175 = sphi 0, %s175
    %s177 = sphi 0, %s175
    %s178 = sphi 0, %s177
    %s192 = sphi 0, %s178
    %s196 = sphi 0, %s196
    %s198 = sphi 0, %s196
    %s199 = sphi 0, %s198
    %s213 = sphi 0, %s199
    %s219 = sphi 0, %s221
    %s222 = sphi 0, %s219
    %s223 = sphi 0, %s222
    %s239 = sphi 0, %s223
  $region4: #{qdnn_forward.1} parent=0 // loop_header_branch
    %18 = sbr.rel (%p16) target = $region8
  $region5: #{qdnn_forward.1} parent=0 // loop_body
    %s20 = ssub.s32 %s15, 1
    %s21 = ssub.s32 %s15, 2
    %s22 = sadd.s32 %s15, 1
    %s23 = ssub.s32 %s15, %s22
    %p24 = scmp.eq.s32.totalorder %s23, 0
    %s26 = sadd.s32 %s25, 1
    %s27 = scalar_select %p24, %s25, %s26
    %p30 = pneg %p24
    %p31 = scmp.eq.s32.totalorder %s15, 2
    %p32 = por %p30, %p31
    %p33 = scmp.ne.s32.totalorder %s25, %s28
    %p34 = scmp.eq.s32.totalorder %s15, 0
    %p35 = por %p33, %p34
    %p36 = scmp.ne.s32.totalorder %s25, %s28
    %p37 = scmp.eq.s32.totalorder %s20, 2
    %p38 = por %p36, %p37
    %p39 = scmp.ne.s32.totalorder %s28, %s29
    %p40 = scmp.eq.s32.totalorder %s20, 0
    %p41 = por %p39, %p40
    %p42 = scmp.ne.s32.totalorder %s28, %s29
    %p43 = scmp.eq.s32.totalorder %s21, 2
    %p44 = por %p42, %p43
    %p46 = scmp.ne.s32.totalorder %s29, %s45
    %p47 = scmp.eq.s32.totalorder %s21, 0
    %p48 = por %p46, %p47
    %s50 = sadd.s32 %s49, 1
    %p53 = scmp.eq.s32.totalorder %s15, 2
    %p54 = scmp.ne.s32.totalorder %s49, %s51
    %p55 = scmp.eq.s32.totalorder %s15, 0
    %p56 = por %p54, %p55
    %p57 = scmp.ne.s32.totalorder %s49, %s51
    %p58 = scmp.eq.s32.totalorder %s20, 2
    %p59 = por %p57, %p58
    %p60 = scmp.ne.s32.totalorder %s51, %s52
    %p61 = scmp.eq.s32.totalorder %s20, 0
    %p62 = por %p60, %p61
    %p63 = scmp.ne.s32.totalorder %s51, %s52
    %p64 = scmp.eq.s32.totalorder %s21, 2
    %p65 = por %p63, %p64
    %p67 = scmp.ne.s32.totalorder %s52, %s66
    %p68 = scmp.eq.s32.totalorder %s21, 0
    %p69 = por %p67, %p68
    %s71 = sadd.s32 %s70, 1
    %p74 = scmp.eq.s32.totalorder %s15, 2
    %p75 = scmp.ne.s32.totalorder %s70, %s72
    %p76 = scmp.eq.s32.totalorder %s15, 0
    %p77 = por %p75, %p76
    %p78 = scmp.ne.s32.totalorder %s70, %s72
    %p79 = scmp.eq.s32.totalorder %s20, 2
    %p80 = por %p78, %p79
    %p81 = scmp.ne.s32.totalorder %s72, %s73
    %p82 = scmp.eq.s32.totalorder %s20, 0
    %p83 = por %p81, %p82
    %p84 = scmp.ne.s32.totalorder %s72, %s73
    %p85 = scmp.eq.s32.totalorder %s21, 2
    %p86 = por %p84, %p85
    %p88 = scmp.ne.s32.totalorder %s73, %s87
    %p89 = scmp.eq.s32.totalorder %s21, 0
    %p90 = por %p88, %p89
    %s92 = sadd.s32 %s91, 1
    %p95 = scmp.eq.s32.totalorder %s15, 2
    %p96 = scmp.ne.s32.totalorder %s91, %s93
    %p97 = scmp.eq.s32.totalorder %s15, 0
    %p98 = por %p96, %p97
    %p99 = scmp.ne.s32.totalorder %s91, %s93
    %p100 = scmp.eq.s32.totalorder %s20, 2
    %p101 = por %p99, %p100
    %p102 = scmp.ne.s32.totalorder %s93, %s94
    %p103 = scmp.eq.s32.totalorder %s20, 0
    %p104 = por %p102, %p103
    %p105 = scmp.ne.s32.totalorder %s93, %s94
    %p106 = scmp.eq.s32.totalorder %s21, 2
    %p107 = por %p105, %p106
    %p109 = scmp.ne.s32.totalorder %s94, %s108
    %p110 = scmp.eq.s32.totalorder %s21, 0
    %p111 = por %p109, %p110
    %s113 = sadd.s32 %s112, 1
    %p116 = scmp.eq.s32.totalorder %s15, 2
    %p117 = scmp.ne.s32.totalorder %s112, %s114
    %p118 = scmp.eq.s32.totalorder %s15, 0
    %p119 = por %p117, %p118
    %p120 = scmp.ne.s32.totalorder %s112, %s114
    %p121 = scmp.eq.s32.totalorder %s20, 2
    %p122 = por %p120, %p121
    %p123 = scmp.ne.s32.totalorder %s114, %s115
    %p124 = scmp.eq.s32.totalorder %s20, 0
    %p125 = por %p123, %p124
    %p126 = scmp.ne.s32.totalorder %s114, %s115
    %p127 = scmp.eq.s32.totalorder %s21, 2
    %p128 = por %p126, %p127
    %p130 = scmp.ne.s32.totalorder %s115, %s129
    %p131 = scmp.eq.s32.totalorder %s21, 0
    %p132 = por %p130, %p131
    %s134 = sadd.s32 %s133, 1
    %p137 = scmp.eq.s32.totalorder %s15, 2
    %p138 = scmp.ne.s32.totalorder %s133, %s135
    %p139 = scmp.eq.s32.totalorder %s15, 0
    %p140 = por %p138, %p139
    %p141 = scmp.ne.s32.totalorder %s133, %s135
    %p142 = scmp.eq.s32.totalorder %s20, 2
    %p143 = por %p141, %p142
    %p144 = scmp.ne.s32.totalorder %s135, %s136
    %p145 = scmp.eq.s32.totalorder %s20, 0
    %p146 = por %p144, %p145
    %p147 = scmp.ne.s32.totalorder %s135, %s136
    %p148 = scmp.eq.s32.totalorder %s21, 2
    %p149 = por %p147, %p148
    %p151 = scmp.ne.s32.totalorder %s136, %s150
    %p152 = scmp.eq.s32.totalorder %s21, 0
    %p153 = por %p151, %p152
    %s155 = sadd.s32 %s154, 1
    %p158 = scmp.eq.s32.totalorder %s15, 2
    %p159 = scmp.ne.s32.totalorder %s154, %s156
    %p160 = scmp.eq.s32.totalorder %s15, 0
    %p161 = por %p159, %p160
    %p162 = scmp.ne.s32.totalorder %s154, %s156
    %p163 = scmp.eq.s32.totalorder %s20, 2
    %p164 = por %p162, %p163
    %p165 = scmp.ne.s32.totalorder %s156, %s157
    %p166 = scmp.eq.s32.totalorder %s20, 0
    %p167 = por %p165, %p166
    %p168 = scmp.ne.s32.totalorder %s156, %s157
    %p169 = scmp.eq.s32.totalorder %s21, 2
    %p170 = por %p168, %p169
    %p172 = scmp.ne.s32.totalorder %s157, %s171
    %p173 = scmp.eq.s32.totalorder %s21, 0
    %p174 = por %p172, %p173
    %s176 = sadd.s32 %s175, 1
    %p179 = scmp.eq.s32.totalorder %s15, 2
    %p180 = scmp.ne.s32.totalorder %s175, %s177
    %p181 = scmp.eq.s32.totalorder %s15, 0
    %p182 = por %p180, %p181
    %p183 = scmp.ne.s32.totalorder %s175, %s177
    %p184 = scmp.eq.s32.totalorder %s20, 2
    %p185 = por %p183, %p184
    %p186 = scmp.ne.s32.totalorder %s177, %s178
    %p187 = scmp.eq.s32.totalorder %s20, 0
    %p188 = por %p186, %p187
    %p189 = scmp.ne.s32.totalorder %s177, %s178
    %p190 = scmp.eq.s32.totalorder %s21, 2
    %p191 = por %p189, %p190
    %p193 = scmp.ne.s32.totalorder %s178, %s192
    %p194 = scmp.eq.s32.totalorder %s21, 0
    %p195 = por %p193, %p194
    %s197 = sadd.s32 %s196, 1
    %p200 = scmp.eq.s32.totalorder %s15, 2
    %p201 = scmp.ne.s32.totalorder %s196, %s198
    %p202 = scmp.eq.s32.totalorder %s15, 0
    %p203 = por %p201, %p202
    %p204 = scmp.ne.s32.totalorder %s196, %s198
    %p205 = scmp.eq.s32.totalorder %s20, 2
    %p206 = por %p204, %p205
    %p207 = scmp.ne.s32.totalorder %s198, %s199
    %p208 = scmp.eq.s32.totalorder %s20, 0
    %p209 = por %p207, %p208
    %p210 = scmp.ne.s32.totalorder %s198, %s199
    %p211 = scmp.eq.s32.totalorder %s21, 2
    %p212 = por %p210, %p211
    %p214 = scmp.ne.s32.totalorder %s199, %s213
    %p215 = scmp.eq.s32.totalorder %s21, 0
    %p216 = por %p214, %p215
    %s217 = ssub.s32 %s15, %s22
    %p218 = scmp.eq.s32.totalorder %s217, 0
    %s220 = sadd.s32 %s219, 1
    %s221 = scalar_select %p218, %s219, %s220
    %p224 = pneg %p218
    %p225 = scmp.eq.s32.totalorder %s15, 2
    %p226 = por %p224, %p225
    %p227 = scmp.ne.s32.totalorder %s219, %s222
    %p228 = scmp.eq.s32.totalorder %s15, 0
    %p229 = por %p227, %p228
    %p230 = scmp.ne.s32.totalorder %s219, %s222
    %p231 = scmp.eq.s32.totalorder %s20, 2
    %p232 = por %p230, %p231
    %p233 = scmp.ne.s32.totalorder %s222, %s223
    %p234 = scmp.eq.s32.totalorder %s20, 0
    %p235 = por %p233, %p234
    %p236 = scmp.ne.s32.totalorder %s222, %s223
    %p237 = scmp.eq.s32.totalorder %s21, 2
    %p238 = por %p236, %p237
    %p240 = scmp.ne.s32.totalorder %s223, %s239
    %p241 = scmp.eq.s32.totalorder %s21, 0
    %p242 = por %p240, %p241
    %p243 = scmp.le.s32.totalorder 1, %s15
    %p244 = scmp.lt.s32.totalorder %s15, 4
    %p245 = pnand %p243, %p244
    %p246 = pneg %p245
    // Predicated region
    $region9: #{qdnn_forward.1} parent=5 // pred_check
      _
    $region10: #{qdnn_forward.1} parent=5 // pred_check_branch
      %248 = sbr.rel (%p245) target = $region12
    $region11: #{qdnn_forward.1} parent=5 // pred_region
      %s249 = ssub.s32 %s15, 1
      // Predicated region
      $region13: #{qdnn_forward.1} parent=11 // pred_check
        %p250 = pneg %p62
      $region14: #{qdnn_forward.1} parent=11 // pred_check_branch
        %252 = sbr.rel (%p250) target = $region16
      $region15: #{qdnn_forward.1} parent=11 // pred_region
        _
      $region16: #{qdnn_forward.1} parent=11 // pred_fallthru
        _
      // Predicated region
      $region17: #{qdnn_forward.1} parent=11 // pred_check
        %p253 = pneg %p83
      $region18: #{qdnn_forward.1} parent=11 // pred_check_branch
        %255 = sbr.rel (%p253) target = $region20
      $region19: #{qdnn_forward.1} parent=11 // pred_region
        _
      $region20: #{qdnn_forward.1} parent=11 // pred_fallthru
        _
      // Predicated region
      $region21: #{qdnn_forward.1} parent=11 // pred_check
        %p256 = pneg %p104
      $region22: #{qdnn_forward.1} parent=11 // pred_check_branch
        %258 = sbr.rel (%p256) target = $region24
      $region23: #{qdnn_forward.1} parent=11 // pred_region
        _
      $region24: #{qdnn_forward.1} parent=11 // pred_fallthru
        _
      // Predicated region
      $region25: #{qdnn_forward.1} parent=11 // pred_check
        %p259 = pneg %p125
      $region26: #{qdnn_forward.1} parent=11 // pred_check_branch
        %261 = sbr.rel (%p259) target = $region28
      $region27: #{qdnn_forward.1} parent=11 // pred_region
        _
      $region28: #{qdnn_forward.1} parent=11 // pred_fallthru
        _
      // Predicated region
      $region29: #{qdnn_forward.1} parent=11 // pred_check
        %p262 = pneg %p146
      $region30: #{qdnn_forward.1} parent=11 // pred_check_branch
        %264 = sbr.rel (%p262) target = $region32
      $region31: #{qdnn_forward.1} parent=11 // pred_region
        _
      $region32: #{qdnn_forward.1} parent=11 // pred_fallthru
        _
      // Predicated region
      $region33: #{qdnn_forward.1} parent=11 // pred_check
        %p265 = pneg %p167
      $region34: #{qdnn_forward.1} parent=11 // pred_check_branch
        %267 = sbr.rel (%p265) target = $region36
      $region35: #{qdnn_forward.1} parent=11 // pred_region
        _
      $region36: #{qdnn_forward.1} parent=11 // pred_fallthru
        _
      // Predicated region
      $region37: #{qdnn_forward.1} parent=11 // pred_check
        %p268 = pneg %p188
      $region38: #{qdnn_forward.1} parent=11 // pred_check_branch
        %270 = sbr.rel (%p268) target = $region40
      $region39: #{qdnn_forward.1} parent=11 // pred_region
        _
      $region40: #{qdnn_forward.1} parent=11 // pred_fallthru
        _
      // Predicated region
      $region41: #{qdnn_forward.1} parent=11 // pred_check
        %p271 = pneg %p209
      $region42: #{qdnn_forward.1} parent=11 // pred_check_branch
        %273 = sbr.rel (%p271) target = $region44
      $region43: #{qdnn_forward.1} parent=11 // pred_region
        _
      $region44: #{qdnn_forward.1} parent=11 // pred_fallthru
        _
    $region12: #{qdnn_forward.1} parent=5 // pred_fallthru
      _
    %p274 = scmp.lt.s32.totalorder %s15, 3
    // Predicated region
    $region45: #{qdnn_forward.1} parent=5 // pred_check
      %p275 = pneg %p274
    $region46: #{qdnn_forward.1} parent=5 // pred_check_branch
      %277 = sbr.rel (%p275) target = $region48
    $region47: #{qdnn_forward.1} parent=5 // pred_region
      // Predicated region
      $region49: #{qdnn_forward.1} parent=47 // pred_check
        %p278 = pneg %p35
      $region50: #{qdnn_forward.1} parent=47 // pred_check_branch
        %280 = sbr.rel (%p278) target = $region52
      $region51: #{qdnn_forward.1} parent=47 // pred_region
        %s281 = smul.u32 16, %s15
        %p282 = scmp.lt.s32.totalorder %s281, 47
        %s283 = scalar_select %p282, %s281, 47
        %s284 = smul.addr %s283, 8
        %s285 = scalar_lea.vmem %s0, %s284
        %s286 = smul.u32 16, %s15
      $region52: #{qdnn_forward.1} parent=47 // pred_fallthru
        _
    $region48: #{qdnn_forward.1} parent=5 // pred_fallthru
      _
    %p287 = scmp.le.s32.totalorder 1, %s15
    %p288 = scmp.lt.s32.totalorder %s15, 4
    %p289 = pnand %p287, %p288
    %p290 = pneg %p289
    // Predicated region
    $region53: #{qdnn_forward.1} parent=5 // pred_check
      _
    $region54: #{qdnn_forward.1} parent=5 // pred_check_branch
      %292 = sbr.rel (%p289) target = $region56
    $region55: #{qdnn_forward.1} parent=5 // pred_region
      %s293 = ssub.s32 %s15, 1
      %s294 = smul.u32 16, %s20
      %p295 = scmp.lt.s32.totalorder %s294, 47
      %s296 = scalar_select %p295, %s294, 47
      %s297 = smul.addr %s296, 8
      %s298 = scalar_lea.vmem %s0, %s297
      %p299 = pneg %p41
      %p300 = pneg %p38
      %p301 = pneg %p62
      %p302 = pneg %p59
      %p303 = pneg %p83
      %p304 = pneg %p80
      %p305 = pneg %p104
      %p306 = pneg %p101
      %p307 = pneg %p125
      %p308 = pneg %p122
      %p309 = pneg %p146
      %p310 = pneg %p143
      %p311 = pneg %p167
      %p312 = pneg %p164
      %p313 = pneg %p188
      %p314 = pneg %p185
      %p315 = pneg %p209
      %p316 = pneg %p206
      %p317 = pneg %p235
      %p318 = pneg %p232
      %s319 = smul.u32 16, %s20
      %p320 = scmp.lt.s32.totalorder %s319, 47
      %s321 = scalar_select %p320, %s319, 47
      %s322 = smul.addr %s321, 8
      %s323 = scalar_lea.vmem %s9, %s322
      %s324 = smul.u32 16, %s20
      %p325 = scmp.lt.s32.totalorder %s324, 47
      %s326 = scalar_select %p325, %s324, 47
      %s327 = smul.addr %s326, 8
      %s328 = scalar_lea.vmem %s0, %s327
      %s329 = smul.u32 16, %s20
      %s330 = smul.u32 16, %s20
      %p331 = scmp.lt.s32.totalorder %s330, 47
      %s332 = scalar_select %p331, %s330, 47
      %s333 = smul.addr %s332, 8
      %s334 = scalar_lea.vmem %s9, %s333
      %s335 = smul.u32 16, %s20
      %v337 = vld [vmem:[%s328] sm:$0xff]
      %v338 = vld [vmem:[%s328 + $0x8] sm:$0xff]
      %v339 = vld [vmem:[%s328 + $0x10] sm:$0xff]
      %v340 = vld [vmem:[%s328 + $0x18] sm:$0xff]
      %v341 = vld [vmem:[%s328 + $0x20] sm:$0xff]
      %v342 = vld [vmem:[%s328 + $0x28] sm:$0xff]
      %v343 = vld [vmem:[%s328 + $0x30] sm:$0xff]
      %v344 = vld [vmem:[%s328 + $0x38] sm:$0xff]
      %v345 = vld [vmem:[%s328 + $0x40] sm:$0xff]
      %v346 = vld [vmem:[%s328 + $0x48] sm:$0xff]
      %v347 = vld [vmem:[%s328 + $0x50] sm:$0xff]
      %v348 = vld [vmem:[%s328 + $0x58] sm:$0xff]
      %v349 = vld [vmem:[%s328 + $0x60] sm:$0xff]
      %v350 = vld [vmem:[%s328 + $0x68] sm:$0xff]
      %v351 = vld [vmem:[%s328 + $0x70] sm:$0xff]
      %v352 = vld [vmem:[%s328 + $0x78] sm:$0xff]
      %v353 = vpack.c.bf16 %v338, %v337
      %v354 = vpack.c.bf16 %v340, %v339
      %v355 = vpack.c.bf16 %v342, %v341
      %v356 = vpack.c.bf16 %v344, %v343
      %v357 = vpack.c.bf16 %v346, %v345
      %v358 = vpack.c.bf16 %v348, %v347
      %v359 = vpack.c.bf16 %v350, %v349
      %v360 = vpack.c.bf16 %v352, %v351
      %v361 = vld [vmem:[%s1] sm:$0xf]
      %v362 = vld [vmem:[%s1 + $0x4] sm:$0xf]
      %v363 = vld [vmem:[%s1 + $0x8] sm:$0xf]
      %v364 = vld [vmem:[%s1 + $0xc] sm:$0xf]
      %v365 = vld [vmem:[%s2] sm:$0x1]
      %v367 = vperm.slane %v365, 0
      %v373 = vunpack.c.l.b16 %v361
      %v374 = vunpack.c.l.b16 %v362
      %v375 = vunpack.c.l.b16 %v363
      %v376 = vunpack.c.l.b16 %v364
      %v377 = vpack.c.b16 %v374, %v373
      %v378 = vpack.c.b16 %v376, %v375
      %vm381 = vcmask 261120
      %v383 = vsel %vm381, %v353, 0
      %v386 = vsel %vm381, %v354, 0
      %v389 = vsel %vm381, %v355, 0
      %v392 = vsel %vm381, %v356, 0
      %v395 = vsel %vm381, %v357, 0
      %v398 = vsel %vm381, %v358, 0
      %v401 = vsel %vm381, %v359, 0
      %v404 = vsel %vm381, %v360, 0
      %406 = vmatpush.bf16.msra.mxu0 0
      %407 = vmatpush.bf16.msra.mxu0 0
      %408 = vmatpush.bf16.msra.mxu0 0
      %409 = vmatpush.bf16.msra.mxu0 0
      %410 = vmatpush.bf16.msra.mxu0 0
      %411 = vmatpush.bf16.msra.mxu0 0
      %412 = vmatpush.bf16.msra.mxu0 %v378
      %413 = vmatpush.bf16.msra.mxu0 %v377
      %414 = vmatmul.bf16.gmra.mxu0 %v383
      %v415 = vpop.f32.mrf.mxu0
      %v416 = vadd.f32 %v367, %v415
      %v417 = vpop.f32.mrf.mxu0
      %v418 = vadd.f32 %v367, %v417
      %419 = vmatmul.bf16.gmra.mxu0 %v386
      %v420 = vpop.f32.mrf.mxu0
      %v421 = vadd.f32 %v367, %v420
      %v422 = vpop.f32.mrf.mxu0
      %v423 = vadd.f32 %v367, %v422
      %424 = vmatmul.bf16.gmra.mxu0 %v389
      %v425 = vpop.f32.mrf.mxu0
      %v426 = vadd.f32 %v367, %v425
      %v427 = vpop.f32.mrf.mxu0
      %v428 = vadd.f32 %v367, %v427
      %429 = vmatmul.bf16.gmra.mxu0 %v392
      %v430 = vpop.f32.mrf.mxu0
      %v431 = vadd.f32 %v367, %v430
      %v432 = vpop.f32.mrf.mxu0
      %v433 = vadd.f32 %v367, %v432
      %434 = vmatmul.bf16.gmra.mxu0 %v395
      %v435 = vpop.f32.mrf.mxu0
      %v436 = vadd.f32 %v367, %v435
      %v437 = vpop.f32.mrf.mxu0
      %v438 = vadd.f32 %v367, %v437
      %439 = vmatmul.bf16.gmra.mxu0 %v398
      %v440 = vpop.f32.mrf.mxu0
      %v441 = vadd.f32 %v367, %v440
      %v442 = vpop.f32.mrf.mxu0
      %v443 = vadd.f32 %v367, %v442
      %444 = vmatmul.bf16.gmra.mxu0 %v401
      %v445 = vpop.f32.mrf.mxu0
      %v446 = vadd.f32 %v367, %v445
      %v447 = vpop.f32.mrf.mxu0
      %v448 = vadd.f32 %v367, %v447
      %449 = vmatmul.bf16.gmra.mxu0 %v404
      %v450 = vpop.f32.mrf.mxu0
      %v451 = vadd.f32 %v367, %v450
      %v452 = vpop.f32.mrf.mxu0
      %v453 = vadd.f32 %v367, %v452
      %454 = vdwg.mxu0
      %v455 = vmax.f32 %v416, 0.0
      %v456 = vmax.f32 %v418, 0.0
      %v457 = vmax.f32 %v421, 0.0
      %v458 = vmax.f32 %v423, 0.0
      %v459 = vmax.f32 %v426, 0.0
      %v460 = vmax.f32 %v428, 0.0
      %v461 = vmax.f32 %v431, 0.0
      %v462 = vmax.f32 %v433, 0.0
      %v463 = vmax.f32 %v436, 0.0
      %v464 = vmax.f32 %v438, 0.0
      %v465 = vmax.f32 %v441, 0.0
      %v466 = vmax.f32 %v443, 0.0
      %v467 = vmax.f32 %v446, 0.0
      %v468 = vmax.f32 %v448, 0.0
      %v469 = vmax.f32 %v451, 0.0
      %v470 = vmax.f32 %v453, 0.0
      %v471 = vpack.c.bf16 %v456, %v455
      %v472 = vpack.c.bf16 %v458, %v457
      %v473 = vpack.c.bf16 %v460, %v459
      %v474 = vpack.c.bf16 %v462, %v461
      %v475 = vpack.c.bf16 %v464, %v463
      %v476 = vpack.c.bf16 %v466, %v465
      %v477 = vpack.c.bf16 %v468, %v467
      %v478 = vpack.c.bf16 %v470, %v469
      %v479 = vld [vmem:[%s3] sm:$0xf]
      %v480 = vld [vmem:[%s3 + $0x4] sm:$0xf]
      %v481 = vld [vmem:[%s3 + $0x8] sm:$0xf]
      %v482 = vld [vmem:[%s3 + $0xc] sm:$0xf]
      %v483 = vld [vmem:[%s3 + $0x10] sm:$0xf]
      %v484 = vld [vmem:[%s3 + $0x14] sm:$0xf]
      %v485 = vld [vmem:[%s3 + $0x18] sm:$0xf]
      %v486 = vld [vmem:[%s3 + $0x1c] sm:$0xf]
      %v487 = vld [vmem:[%s3 + $0x20] sm:$0xf]
      %v488 = vld [vmem:[%s3 + $0x24] sm:$0xf]
      %v489 = vld [vmem:[%s3 + $0x28] sm:$0xf]
      %v490 = vld [vmem:[%s3 + $0x2c] sm:$0xf]
      %v491 = vld [vmem:[%s3 + $0x30] sm:$0xf]
      %v492 = vld [vmem:[%s3 + $0x34] sm:$0xf]
      %v493 = vld [vmem:[%s3 + $0x38] sm:$0xf]
      %v494 = vld [vmem:[%s3 + $0x3c] sm:$0xf]
      %v495 = vld [vmem:[%s4] sm:$0x1]
      %v497 = vperm.slane %v495, 0
      %v515 = vunpack.c.l.b16 %v479
      %v516 = vunpack.c.l.b16 %v480
      %v517 = vunpack.c.l.b16 %v481
      %v518 = vunpack.c.l.b16 %v482
      %v519 = vunpack.c.l.b16 %v483
      %v520 = vunpack.c.l.b16 %v484
      %v521 = vunpack.c.l.b16 %v485
      %v522 = vunpack.c.l.b16 %v486
      %v523 = vunpack.c.l.b16 %v487
      %v524 = vunpack.c.l.b16 %v488
      %v525 = vunpack.c.l.b16 %v489
      %v526 = vunpack.c.l.b16 %v490
      %v527 = vunpack.c.l.b16 %v491
      %v528 = vunpack.c.l.b16 %v492
      %v529 = vunpack.c.l.b16 %v493
      %v530 = vunpack.c.l.b16 %v494
      %v531 = vpack.c.b16 %v516, %v515
      %v532 = vpack.c.b16 %v518, %v517
      %v533 = vpack.c.b16 %v520, %v519
      %v534 = vpack.c.b16 %v522, %v521
      %v535 = vpack.c.b16 %v524, %v523
      %v536 = vpack.c.b16 %v526, %v525
      %v537 = vpack.c.b16 %v528, %v527
      %v538 = vpack.c.b16 %v530, %v529
      %547 = vmatpush.bf16.msra.mxu0 %v538
      %548 = vmatpush.bf16.msra.mxu0 %v537
      %549 = vmatpush.bf16.msra.mxu0 %v536
      %550 = vmatpush.bf16.msra.mxu0 %v535
      %551 = vmatpush.bf16.msra.mxu0 %v534
      %552 = vmatpush.bf16.msra.mxu0 %v533
      %553 = vmatpush.bf16.msra.mxu0 %v532
      %554 = vmatpush.bf16.msra.mxu0 %v531
      %555 = vmatmul.bf16.gmra.mxu0 %v471
      %v556 = vpop.f32.mrf.mxu0
      %v557 = vadd.f32 %v497, %v556
      %v558 = vpop.f32.mrf.mxu0
      %v559 = vadd.f32 %v497, %v558
      %560 = vmatmul.bf16.gmra.mxu0 %v472
      %v561 = vpop.f32.mrf.mxu0
      %v562 = vadd.f32 %v497, %v561
      %v563 = vpop.f32.mrf.mxu0
      %v564 = vadd.f32 %v497, %v563
      %565 = vmatmul.bf16.gmra.mxu0 %v473
      %v566 = vpop.f32.mrf.mxu0
      %v567 = vadd.f32 %v497, %v566
      %v568 = vpop.f32.mrf.mxu0
      %v569 = vadd.f32 %v497, %v568
      %570 = vmatmul.bf16.gmra.mxu0 %v474
      %v571 = vpop.f32.mrf.mxu0
      %v572 = vadd.f32 %v497, %v571
      %v573 = vpop.f32.mrf.mxu0
      %v574 = vadd.f32 %v497, %v573
      %575 = vmatmul.bf16.gmra.mxu0 %v475
      %v576 = vpop.f32.mrf.mxu0
      %v577 = vadd.f32 %v497, %v576
      %v578 = vpop.f32.mrf.mxu0
      %v579 = vadd.f32 %v497, %v578
      %580 = vmatmul.bf16.gmra.mxu0 %v476
      %v581 = vpop.f32.mrf.mxu0
      %v582 = vadd.f32 %v497, %v581
      %v583 = vpop.f32.mrf.mxu0
      %v584 = vadd.f32 %v497, %v583
      %585 = vmatmul.bf16.gmra.mxu0 %v477
      %v586 = vpop.f32.mrf.mxu0
      %v587 = vadd.f32 %v497, %v586
      %v588 = vpop.f32.mrf.mxu0
      %v589 = vadd.f32 %v497, %v588
      %590 = vmatmul.bf16.gmra.mxu0 %v478
      %v591 = vpop.f32.mrf.mxu0
      %v592 = vadd.f32 %v497, %v591
      %v593 = vpop.f32.mrf.mxu0
      %v594 = vadd.f32 %v497, %v593
      %595 = vdwg.mxu0
      %v596 = vmax.f32 %v557, 0.0
      %v597 = vmax.f32 %v559, 0.0
      %v598 = vmax.f32 %v562, 0.0
      %v599 = vmax.f32 %v564, 0.0
      %v600 = vmax.f32 %v567, 0.0
      %v601 = vmax.f32 %v569, 0.0
      %v602 = vmax.f32 %v572, 0.0
      %v603 = vmax.f32 %v574, 0.0
      %v604 = vmax.f32 %v577, 0.0
      %v605 = vmax.f32 %v579, 0.0
      %v606 = vmax.f32 %v582, 0.0
      %v607 = vmax.f32 %v584, 0.0
      %v608 = vmax.f32 %v587, 0.0
      %v609 = vmax.f32 %v589, 0.0
      %v610 = vmax.f32 %v592, 0.0
      %v611 = vmax.f32 %v594, 0.0
      %v612 = vpack.c.bf16 %v597, %v596
      %v613 = vpack.c.bf16 %v599, %v598
      %v614 = vpack.c.bf16 %v601, %v600
      %v615 = vpack.c.bf16 %v603, %v602
      %v616 = vpack.c.bf16 %v605, %v604
      %v617 = vpack.c.bf16 %v607, %v606
      %v618 = vpack.c.bf16 %v609, %v608
      %v619 = vpack.c.bf16 %v611, %v610
      %v620 = vld [vmem:[%s5] sm:$0xf]
      %v621 = vld [vmem:[%s5 + $0x4] sm:$0xf]
      %v622 = vld [vmem:[%s5 + $0x8] sm:$0xf]
      %v623 = vld [vmem:[%s5 + $0xc] sm:$0xf]
      %v624 = vld [vmem:[%s5 + $0x10] sm:$0xf]
      %v625 = vld [vmem:[%s5 + $0x14] sm:$0xf]
      %v626 = vld [vmem:[%s5 + $0x18] sm:$0xf]
      %v627 = vld [vmem:[%s5 + $0x1c] sm:$0xf]
      %v628 = vld [vmem:[%s6] sm:$0x1]
      %v630 = vperm.slane %v628, 0
      %v640 = vunpack.c.l.b16 %v620
      %v641 = vunpack.c.l.b16 %v621
      %v642 = vunpack.c.l.b16 %v622
      %v643 = vunpack.c.l.b16 %v623
      %v644 = vunpack.c.l.b16 %v624
      %v645 = vunpack.c.l.b16 %v625
      %v646 = vunpack.c.l.b16 %v626
      %v647 = vunpack.c.l.b16 %v627
      %v648 = vpack.c.b16 %v641, %v640
      %v649 = vpack.c.b16 %v643, %v642
      %v650 = vpack.c.b16 %v645, %v644
      %v651 = vpack.c.b16 %v647, %v646
      %vm656 = vcmask 523264
      %v658 = vsel %vm656, %v612, 0
      %v661 = vsel %vm656, %v613, 0
      %v664 = vsel %vm656, %v614, 0
      %v667 = vsel %vm656, %v615, 0
      %v670 = vsel %vm656, %v616, 0
      %v673 = vsel %vm656, %v617, 0
      %v676 = vsel %vm656, %v618, 0
      %v679 = vsel %vm656, %v619, 0
      %681 = vmatpush.bf16.msra.mxu0 0
      %682 = vmatpush.bf16.msra.mxu0 0
      %683 = vmatpush.bf16.msra.mxu0 0
      %684 = vmatpush.bf16.msra.mxu0 0
      %685 = vmatpush.bf16.msra.mxu0 %v651
      %686 = vmatpush.bf16.msra.mxu0 %v650
      %687 = vmatpush.bf16.msra.mxu0 %v649
      %688 = vmatpush.bf16.msra.mxu0 %v648
      %689 = vmatmul.bf16.gmra.mxu0 %v658
      %v690 = vpop.f32.mrf.mxu0
      %v691 = vadd.f32 %v630, %v690
      %v692 = vpop.f32.mrf.mxu0
      %v693 = vadd.f32 %v630, %v692
      %694 = vmatmul.bf16.gmra.mxu0 %v661
      %v695 = vpop.f32.mrf.mxu0
      %v696 = vadd.f32 %v630, %v695
      %v697 = vpop.f32.mrf.mxu0
      %v698 = vadd.f32 %v630, %v697
      %699 = vmatmul.bf16.gmra.mxu0 %v664
      %v700 = vpop.f32.mrf.mxu0
      %v701 = vadd.f32 %v630, %v700
      %v702 = vpop.f32.mrf.mxu0
      %v703 = vadd.f32 %v630, %v702
      %704 = vmatmul.bf16.gmra.mxu0 %v667
      %v705 = vpop.f32.mrf.mxu0
      %v706 = vadd.f32 %v630, %v705
      %v707 = vpop.f32.mrf.mxu0
      %v708 = vadd.f32 %v630, %v707
      %709 = vmatmul.bf16.gmra.mxu0 %v670
      %v710 = vpop.f32.mrf.mxu0
      %v711 = vadd.f32 %v630, %v710
      %v712 = vpop.f32.mrf.mxu0
      %v713 = vadd.f32 %v630, %v712
      %714 = vmatmul.bf16.gmra.mxu0 %v673
      %v715 = vpop.f32.mrf.mxu0
      %v716 = vadd.f32 %v630, %v715
      %v717 = vpop.f32.mrf.mxu0
      %v718 = vadd.f32 %v630, %v717
      %719 = vmatmul.bf16.gmra.mxu0 %v676
      %v720 = vpop.f32.mrf.mxu0
      %v721 = vadd.f32 %v630, %v720
      %v722 = vpop.f32.mrf.mxu0
      %v723 = vadd.f32 %v630, %v722
      %724 = vmatmul.bf16.gmra.mxu0 %v679
      %v725 = vpop.f32.mrf.mxu0
      %v726 = vadd.f32 %v630, %v725
      %v727 = vpop.f32.mrf.mxu0
      %v728 = vadd.f32 %v630, %v727
      %729 = vdwg.mxu0
      %v730 = vmax.f32 %v691, 0.0
      %v731 = vmax.f32 %v693, 0.0
      %v732 = vmax.f32 %v696, 0.0
      %v733 = vmax.f32 %v698, 0.0
      %v734 = vmax.f32 %v701, 0.0
      %v735 = vmax.f32 %v703, 0.0
      %v736 = vmax.f32 %v706, 0.0
      %v737 = vmax.f32 %v708, 0.0
      %v738 = vmax.f32 %v711, 0.0
      %v739 = vmax.f32 %v713, 0.0
      %v740 = vmax.f32 %v716, 0.0
      %v741 = vmax.f32 %v718, 0.0
      %v742 = vmax.f32 %v721, 0.0
      %v743 = vmax.f32 %v723, 0.0
      %v744 = vmax.f32 %v726, 0.0
      %v745 = vmax.f32 %v728, 0.0
      %v746 = vpack.c.bf16 %v731, %v730
      %v747 = vpack.c.bf16 %v733, %v732
      %v748 = vpack.c.bf16 %v735, %v734
      %v749 = vpack.c.bf16 %v737, %v736
      %v750 = vpack.c.bf16 %v739, %v738
      %v751 = vpack.c.bf16 %v741, %v740
      %v752 = vpack.c.bf16 %v743, %v742
      %v753 = vpack.c.bf16 %v745, %v744
      %v754 = vld [vmem:[%s7] sm:$0xf]
      %v755 = vld [vmem:[%s7 + $0x4] sm:$0xf]
      %v756 = vld [vmem:[%s7 + $0x8] sm:$0xf]
      %v757 = vld [vmem:[%s7 + $0xc] sm:$0xf]
      %v758 = vld [vmem:[%s8] sm:$0x1]
      %v760 = vperm.slane %v758, 0
      %v766 = vunpack.c.l.b16 %v754
      %v767 = vunpack.c.l.b16 %v755
      %v768 = vunpack.c.l.b16 %v756
      %v769 = vunpack.c.l.b16 %v757
      %v770 = vpack.c.b16 %v767, %v766
      %v771 = vpack.c.b16 %v769, %v768
      %v775 = vsel %vm381, %v746, 0
      %v778 = vsel %vm381, %v747, 0
      %v781 = vsel %vm381, %v748, 0
      %v784 = vsel %vm381, %v749, 0
      %v787 = vsel %vm381, %v750, 0
      %v790 = vsel %vm381, %v751, 0
      %v793 = vsel %vm381, %v752, 0
      %v796 = vsel %vm381, %v753, 0
      %798 = vmatpush.bf16.msra.mxu0 0
      %799 = vmatpush.bf16.msra.mxu0 0
      %800 = vmatpush.bf16.msra.mxu0 0
      %801 = vmatpush.bf16.msra.mxu0 0
      %802 = vmatpush.bf16.msra.mxu0 0
      %803 = vmatpush.bf16.msra.mxu0 0
      %804 = vmatpush.bf16.msra.mxu0 %v771
      %805 = vmatpush.bf16.msra.mxu0 %v770
      %806 = vmatmul.bf16.gmra.mxu0 %v775
      %v807 = vpop.f32.mrf.mxu0
      %v808 = vadd.f32 %v760, %v807
      %v809 = vpop.f32.mrf.mxu0
      %v810 = vadd.f32 %v760, %v809
      %811 = vmatmul.bf16.gmra.mxu0 %v778
      %v812 = vpop.f32.mrf.mxu0
      %v813 = vadd.f32 %v760, %v812
      %v814 = vpop.f32.mrf.mxu0
      %v815 = vadd.f32 %v760, %v814
      %816 = vmatmul.bf16.gmra.mxu0 %v781
      %v817 = vpop.f32.mrf.mxu0
      %v818 = vadd.f32 %v760, %v817
      %v819 = vpop.f32.mrf.mxu0
      %v820 = vadd.f32 %v760, %v819
      %821 = vmatmul.bf16.gmra.mxu0 %v784
      %v822 = vpop.f32.mrf.mxu0
      %v823 = vadd.f32 %v760, %v822
      %v824 = vpop.f32.mrf.mxu0
      %v825 = vadd.f32 %v760, %v824
      %826 = vmatmul.bf16.gmra.mxu0 %v787
      %v827 = vpop.f32.mrf.mxu0
      %v828 = vadd.f32 %v760, %v827
      %v829 = vpop.f32.mrf.mxu0
      %v830 = vadd.f32 %v760, %v829
      %831 = vmatmul.bf16.gmra.mxu0 %v790
      %v832 = vpop.f32.mrf.mxu0
      %v833 = vadd.f32 %v760, %v832
      %v834 = vpop.f32.mrf.mxu0
      %v835 = vadd.f32 %v760, %v834
      %836 = vmatmul.bf16.gmra.mxu0 %v793
      %v837 = vpop.f32.mrf.mxu0
      %v838 = vadd.f32 %v760, %v837
      %v839 = vpop.f32.mrf.mxu0
      %v840 = vadd.f32 %v760, %v839
      %841 = vmatmul.bf16.gmra.mxu0 %v796
      %v842 = vpop.f32.mrf.mxu0
      %v843 = vadd.f32 %v760, %v842
      %v844 = vpop.f32.mrf.mxu0
      %v845 = vadd.f32 %v760, %v844
      %846 = vdwg.mxu0
      %vm847 = vcmask 15360
      %848 = vst.msk [vmem:[%s334] sm:$0xff] %vm847, %v808
      %849 = vst.msk [vmem:[%s334 + $0x8] sm:$0xff] %vm847, %v810
      %850 = vst.msk [vmem:[%s334 + $0x10] sm:$0xff] %vm847, %v813
      %851 = vst.msk [vmem:[%s334 + $0x18] sm:$0xff] %vm847, %v815
      %852 = vst.msk [vmem:[%s334 + $0x20] sm:$0xff] %vm847, %v818
      %853 = vst.msk [vmem:[%s334 + $0x28] sm:$0xff] %vm847, %v820
      %854 = vst.msk [vmem:[%s334 + $0x30] sm:$0xff] %vm847, %v823
      %855 = vst.msk [vmem:[%s334 + $0x38] sm:$0xff] %vm847, %v825
      %856 = vst.msk [vmem:[%s334 + $0x40] sm:$0xff] %vm847, %v828
      %857 = vst.msk [vmem:[%s334 + $0x48] sm:$0xff] %vm847, %v830
      %858 = vst.msk [vmem:[%s334 + $0x50] sm:$0xff] %vm847, %v833
      %859 = vst.msk [vmem:[%s334 + $0x58] sm:$0xff] %vm847, %v835
      %860 = vst.msk [vmem:[%s334 + $0x60] sm:$0xff] %vm847, %v838
      %861 = vst.msk [vmem:[%s334 + $0x68] sm:$0xff] %vm847, %v840
      %862 = vst.msk [vmem:[%s334 + $0x70] sm:$0xff] %vm847, %v843
      %863 = vst.msk [vmem:[%s334 + $0x78] sm:$0xff] %vm847, %v845
      %s864 = smul.u32 16, %s20
      %p865 = scmp.lt.s32.totalorder %s864, 47
      %s866 = scalar_select %p865, %s864, 47
      %s867 = smul.addr %s866, 8
      %s868 = scalar_lea.vmem %s9, %s867
      // Predicated region
      $region57: #{qdnn_forward.1} parent=55 // pred_check
        %p869 = pneg %p232
      $region58: #{qdnn_forward.1} parent=55 // pred_check_branch
        %871 = sbr.rel (%p869) target = $region60
      $region59: #{qdnn_forward.1} parent=55 // pred_region
        %s872 = smul.u32 16, %s20
      $region60: #{qdnn_forward.1} parent=55 // pred_fallthru
        _
    $region56: #{qdnn_forward.1} parent=5 // pred_fallthru
      _
    %p873 = scmp.le.s32.totalorder 2, %s15
    // Predicated region
    $region61: #{qdnn_forward.1} parent=5 // pred_check
      %p874 = pneg %p873
    $region62: #{qdnn_forward.1} parent=5 // pred_check_branch
      %876 = sbr.rel (%p874) target = $region64
    $region63: #{qdnn_forward.1} parent=5 // pred_region
      %s877 = ssub.s32 %s15, 2
      // Predicated region
      $region65: #{qdnn_forward.1} parent=63 // pred_check
        %p878 = pneg %p238
      $region66: #{qdnn_forward.1} parent=63 // pred_check_branch
        %880 = sbr.rel (%p878) target = $region68
      $region67: #{qdnn_forward.1} parent=63 // pred_region
        %s881 = smul.u32 16, %s21
        %p882 = scmp.lt.s32.totalorder %s881, 47
        %s883 = scalar_select %p882, %s881, 47
        %s884 = smul.addr %s883, 8
        %s885 = scalar_lea.vmem %s9, %s884
      $region68: #{qdnn_forward.1} parent=63 // pred_fallthru
        _
    $region64: #{qdnn_forward.1} parent=5 // pred_fallthru
      _
  $region6: #{qdnn_forward.1} parent=0 // loop_footer
    %s19 = sadd.s32 1, %s15
  $region7: #{qdnn_forward.1} parent=0 // loop_footer_branch
    %14 = sbr.rel target = $region3
  $region8: #{qdnn_forward.1} parent=0 // loop_exit
    _

</llo_original>
